<compile_context>
chip_gen: v6e
topology: v6e:2x2x1
jax: 0.10.0
libtpu: 0.0.40
codegen_flags: <defaults>
</compile_context>

<pallas_src>
import functools

import jax
import jax.numpy as jnp
from jax.experimental import pallas as pl
from jax.experimental.pallas import tpu as pltpu

EPS = 1e-8
LANES = 128                 # vreg lane width
SMALL_N_THRESHOLD = 1 << 20  # ~1M elements: below this, pallas launch overhead loses


def _vmem_capacity_bytes():
    """Physical VMEM per core; conservative fallback = v7x (64 MiB)."""
    try:
        info = pltpu.get_tpu_info()
        cap = getattr(info, "vmem_capacity_bytes", None)
        if cap:
            return int(cap)
    except Exception:
        pass
    return 64 << 20


def _proportion_loss_kernel(x_ref, t_ref, o_ref, *, metric, tile_rows,
                            blocks_per_core, total_rows, needs_mask):
    """Streams sum of per-element loss into a resident (8, cols) partial block."""
    p = pl.program_id(0)   # "parallel" core axis
    i = pl.program_id(1)   # "arbitrary" reduction axis

    @pl.when(i == 0)
    def _():
        o_ref[...] = jnp.zeros_like(o_ref)

    x = x_ref[...].astype(jnp.float32)
    t = t_ref[...].astype(jnp.float32)
    if metric == "ce":
        val = t * jnp.log(x + EPS)        # negation folded into the final scale
    elif metric == "l1":
        val = jnp.abs(x - t)
    else:                                  # 'mse'
        d = x - t
        val = d * d

    if needs_mask:
        # Zero rows past the real extent (ragged last block / padded grid slots).
        slot = p * blocks_per_core + i
        row = slot * tile_rows + jax.lax.broadcasted_iota(jnp.int32, val.shape, 0)
        val = jnp.where(row < total_rows, val, 0.0)

    # Pure VPU vector adds (no per-step cross-sublane/lane XLU reduce): group rows
    # by sublane (8) and fold onto the resident (8, cols) accumulator block.
    o_ref[...] += val.reshape(tile_rows // 8, 8, val.shape[-1]).sum(axis=0)


def _proportion_loss_ref(inp, tgt, *, metric="ce", reduction="mean"):
    """Pure-JAX reference; also the small-size / fallback path."""
    x = inp.astype(jnp.float32)
    t = tgt.astype(jnp.float32)
    if metric == "ce":
        loss = -t * jnp.log(x + EPS)
    elif metric == "l1":
        loss = jnp.abs(x - t)
    else:
        loss = (x - t) ** 2
    loss = jnp.mean(loss, axis=-1)
    return jnp.mean(loss) if reduction == "mean" else jnp.sum(loss)


def proportion_loss(inp, tgt, *, metric="ce", reduction="mean",
                    force_kernel=False, max_tile_rows=None):
    """ProportionLoss(metric, consistency='none', reduction) forward."""
    assert inp.shape == tgt.shape and inp.ndim == 2
    assert metric in ("ce", "l1", "mse")
    assert reduction in ("mean", "sum")
    B, C = inp.shape
    N = B * C

    if not force_kernel and N < SMALL_N_THRESHOLD:
        return _proportion_loss_ref(inp, tgt, metric=metric, reduction=reduction)

    # ---- layout: lane-dense (rows, 128) view iff the reshape is free (no copy) ----
    if N % LANES == 0 and (N // LANES) >= 8:
        rows, cols = N // LANES, LANES
        x2 = inp.reshape(rows, cols)
        t2 = tgt.reshape(rows, cols)
    elif B >= 8:
        rows, cols = B, C               # stream the (B, C) layout directly
        x2, t2 = inp, tgt
    else:
        return _proportion_loss_ref(inp, tgt, metric=metric, reduction=reduction)

    # ---- generation-aware tile sizing (v7x: 64 MiB physical VMEM; v5e/v6e: 128) ----
    vmem_cap = _vmem_capacity_bytes()
    vmem_limit = int(min(vmem_cap * 3 // 4, 96 << 20))       # 48 MiB v7x, 96 MiB v5e/v6e
    lane_padded = -(-cols // LANES) * LANES
    bytes_per_row = lane_padded * 4                           # f32 VMEM footprint / row
    max_tile_bytes = min(8 << 20, vmem_limit // 6)            # 2 inputs x 2 bufs + slack
    tile_cap = max(8, (max_tile_bytes // bytes_per_row) // 8 * 8)
    if max_tile_rows is not None:
        assert max_tile_rows % 8 == 0
        tile_cap = min(tile_cap, max_tile_rows)
    tile_rows = min(tile_cap, (rows // 8) * 8)                # multiple of 8, <= rows

    nblocks = -(-rows // tile_rows)
    n_cores = 2 if nblocks >= 2 else 1       # leading "parallel" axis (both TCs on v7x)
    bpc = -(-nblocks // n_cores)             # blocks per core
    needs_mask = (n_cores * bpc * tile_rows) != rows

    # Fold reduction + sign into one scalar applied once at the end.
    scale = (1.0 / float(N)) if reduction == "mean" else (1.0 / float(C))
    if metric == "ce":
        scale = -scale

    def in_map(p, i):
        s = p * bpc + i
        return (jnp.minimum(s, nblocks - 1), 0)   # clamp padded slots (masked in-kernel)

    kernel = functools.partial(
        _proportion_loss_kernel, metric=metric, tile_rows=tile_rows,
        blocks_per_core=bpc, total_rows=rows, needs_mask=needs_mask)

    partials = pl.pallas_call(
        kernel,
        out_shape=jax.ShapeDtypeStruct((n_cores * 8, cols), jnp.float32),
        grid_spec=pltpu.PrefetchScalarGridSpec(
            num_scalar_prefetch=0,
            grid=(n_cores, bpc),
            in_specs=[pl.BlockSpec((tile_rows, cols), in_map),
                      pl.BlockSpec((tile_rows, cols), in_map)],
            out_specs=pl.BlockSpec((8, cols), lambda p, i: (p, 0)),
        ),
        compiler_params=pltpu.CompilerParams(
            dimension_semantics=("parallel", "arbitrary"),
            vmem_limit_bytes=vmem_limit),
        cost_estimate=pl.CostEstimate(
            flops=3 * N,
            transcendentals=(N if metric == "ce" else 0),
            bytes_accessed=2 * inp.dtype.itemsize * N + n_cores * 8 * cols * 4),
    )(x2, t2)

    # Tiny epilogue: cross-core / cross-lane / cross-sublane sum + final scale.
    return jnp.sum(partials) * scale


if __name__ == "__main__":
    key = jax.random.PRNGKey(0)
    k1, k2, k3, k4, k5, k6 = jax.random.split(key, 6)

    def make_pair(kx, kt, b, c):
        logits = jax.random.normal(kx, (b, c), dtype=jnp.float32)
        x = jax.nn.softmax(logits, axis=-1)
        t_raw = jax.random.uniform(kt, (b, c), dtype=jnp.float32)
        t = t_raw / jnp.sum(t_raw, axis=-1, keepdims=True)
        return x, t

    # case 1: bag-level shape (8 bags, 32 classes) — single block, (B, C) layout path
    x1, t1 = make_pair(k1, k2, 8, 32)
    out1 = jax.block_until_ready(proportion_loss(x1, t1, force_kernel=True))
    ref1 = _proportion_loss_ref(x1, t1)
    assert jnp.allclose(out1, ref1, rtol=1e-5, atol=1e-6), (out1, ref1)

    # case 2: lane-dense path, forced small tiles -> multi-block grid, 2-way
    # "parallel" axis, resident output-block accumulator
    x2, t2 = make_pair(k3, k4, 64, 128)
    out2 = jax.block_until_ready(
        proportion_loss(x2, t2, force_kernel=True, max_tile_rows=8))
    ref2 = _proportion_loss_ref(x2, t2)
    assert jnp.allclose(out2, ref2, rtol=1e-5, atol=1e-6), (out2, ref2)

    # case 3: ragged row count -> exercises the in-kernel tail mask (no jnp.pad anywhere)
    x3, t3 = make_pair(k5, k6, 20, 96)
    out3 = jax.block_until_ready(
        proportion_loss(x3, t3, force_kernel=True, max_tile_rows=8))
    ref3 = _proportion_loss_ref(x3, t3)
    assert jnp.allclose(out3, ref3, rtol=1e-5, atol=1e-6), (out3, ref3)

    print("KERNEL_OK")
</pallas_src>

<mosaic_0001>
module attributes {stable_mosaic.version = 11 : i64} {
  func.func @_proportion_loss_kernel(%arg0: i32, %arg1: i32, %arg2: memref<8x32xf32, #tpu.memory_space<vmem>>, %arg3: memref<8x32xf32, #tpu.memory_space<vmem>>, %arg4: memref<8x32xf32, #tpu.memory_space<vmem>>) attributes {dimension_semantics = [#tpu.dimension_semantics<parallel>, #tpu.dimension_semantics<arbitrary>], iteration_bounds = array<i64: 1, 1>, scalar_prefetch = 0 : i64, scratch_operands = 0 : i64, tpu.core_type = #tpu.core_type<tc>, window_params = [{transform_indices = @transform_0, window_bounds = array<i64: 8, 32>}, {transform_indices = @transform_1, window_bounds = array<i64: 8, 32>}, {transform_indices = @transform_2, window_bounds = array<i64: 8, 32>}]} {
    %c0_i32 = arith.constant 0 : i32
    %0 = arith.cmpi eq, %arg1, %c0_i32 : i32
    %1 = arith.extui %0 : i1 to i32
    %c0_i32_0 = arith.constant 0 : i32
    %2 = arith.cmpi ne, %1, %c0_i32_0 : i32
    scf.if %2 {
      %cst_9 = arith.constant 0.000000e+00 : f32
      %14 = vector.broadcast %cst_9 : f32 to vector<8x32xf32>
      %c0_10 = arith.constant 0 : index
      %c0_11 = arith.constant 0 : index
      %15 = vector.load %arg4[%c0_10, %c0_11] : memref<8x32xf32, #tpu.memory_space<vmem>>, vector<8x32xf32>
      tpu.vector_store %arg4[%c0_10, %c0_11], %14 {strides = array<i32>} : memref<8x32xf32, #tpu.memory_space<vmem>>, vector<8x32xf32>,
    } else {
    }
    %c0 = arith.constant 0 : index
    %c0_1 = arith.constant 0 : index
    %3 = vector.load %arg2[%c0, %c0_1] : memref<8x32xf32, #tpu.memory_space<vmem>>, vector<8x32xf32>
    %c0_2 = arith.constant 0 : index
    %c0_3 = arith.constant 0 : index
    %4 = vector.load %arg3[%c0_2, %c0_3] : memref<8x32xf32, #tpu.memory_space<vmem>>, vector<8x32xf32>
    %cst = arith.constant 9.99999993E-9 : f32
    %5 = vector.broadcast %cst : f32 to vector<8x32xf32>
    %6 = arith.addf %3, %5 : vector<8x32xf32>
    %7 = math.log %6 : vector<8x32xf32>
    %8 = arith.mulf %4, %7 : vector<8x32xf32>
    %c0_4 = arith.constant 0 : index
    %c0_5 = arith.constant 0 : index
    %9 = vector.load %arg4[%c0_4, %c0_5] : memref<8x32xf32, #tpu.memory_space<vmem>>, vector<8x32xf32>
    %10 = vector.shape_cast %8 : vector<8x32xf32> to vector<1x8x32xf32>
    %cst_6 = arith.constant dense<0.000000e+00> : vector<8x32xf32>
    %11 = vector.multi_reduction <add>, %10, %cst_6 [0] : vector<1x8x32xf32> to vector<8x32xf32>
    %12 = arith.addf %9, %11 : vector<8x32xf32>
    %c0_7 = arith.constant 0 : index
    %c0_8 = arith.constant 0 : index
    %13 = vector.load %arg4[%c0_7, %c0_8] : memref<8x32xf32, #tpu.memory_space<vmem>>, vector<8x32xf32>
    tpu.vector_store %arg4[%c0_7, %c0_8], %12 {strides = array<i32>} : memref<8x32xf32, #tpu.memory_space<vmem>>, vector<8x32xf32>,
    return
  }
  func.func @transform_0(%arg0: i32, %arg1: i32) -> (i32, i32) {
    %c1_i32 = arith.constant 1 : i32
    %0 = arith.muli %arg0, %c1_i32 : i32
    %1 = arith.addi %0, %arg1 : i32
    %c0_i32 = arith.constant 0 : i32
    %2 = arith.minsi %1, %c0_i32 : i32
    %c0_i32_0 = arith.constant 0 : i32
    %c0_i32_1 = arith.constant 0 : i32
    return %2, %c0_i32_0 : i32, i32
  }
  func.func @transform_1(%arg0: i32, %arg1: i32) -> (i32, i32) {
    %c1_i32 = arith.constant 1 : i32
    %0 = arith.muli %arg0, %c1_i32 : i32
    %1 = arith.addi %0, %arg1 : i32
    %c0_i32 = arith.constant 0 : i32
    %2 = arith.minsi %1, %c0_i32 : i32
    %c0_i32_0 = arith.constant 0 : i32
    %c0_i32_1 = arith.constant 0 : i32
    return %2, %c0_i32_0 : i32, i32
  }
  func.func @transform_2(%arg0: i32, %arg1: i32) -> (i32, i32) {
    %c0_i32 = arith.constant 0 : i32
    %c0_i32_0 = arith.constant 0 : i32
    return %arg0, %c0_i32 : i32, i32
  }
}

</mosaic_0001>

<llo_original>
// kernel: tpu_custom_call.1
$region0: #{tpu_custom_call.1}
  #allocation0 [shape = 'u32[]', space=smem, size = 0x4, offset = 0x4, fixed_abs, tag = 'smem constant byte address 0x4 - core index']
  #allocation1 [shape = 'u32[144,128]{1,0:T(1,128)}', space=vmem, size = 0x12000, scoped, tag = 'internal scratch']
  %s0 = inlined_call_operand.hbm [shape: f32[8,32], index: 0, kind: input, shape index: {}]
  %s1 = inlined_call_operand.hbm [shape: f32[8,32], index: 1, kind: input, shape index: {}]
  %s2 = inlined_call_operand.hbm [shape: f32[8,32], index: 2, kind: output, shape index: {}]
  %s3 = sld [smem:[#allocation0]]
  $region30: #{tpu_custom_call.1} parent=0
    _
  %s5 = ssub.s32 1, %s3
  %s6 = scalar_select 0, %s5, %s3
  $region1: #{tpu_custom_call.1} parent=0
    #allocation2 [shape = 'u8[4096]{0}', space=vmem, size = 0x1000, scoped, tag = 'input window, operand 0, single buffered']
    #allocation3 [shape = 's32[1]{0}', space=sflag, size = 0x4, scoped, tag = 'scoped memory for tpu_custom_call.1']
    #allocation4 [shape = 's32[1]{0}', space=sflag, size = 0x4, scoped, tag = 'scoped memory for tpu_custom_call.1']
    #allocation5 [shape = 'u8[4096]{0}', space=vmem, size = 0x1000, scoped, tag = 'input window, operand 1, single buffered']
    #allocation6 [shape = 's32[1]{0}', space=sflag, size = 0x4, scoped, tag = 'scoped memory for tpu_custom_call.1']
    #allocation7 [shape = 'u8[4096]{0}', space=vmem, size = 0x1000, scoped, tag = 'output window, operand 0, single buffered']
    %7 = vsyncpa [#allocation3], 0
    %8 = vsyncpa [#allocation6], 0
    %9 = vsyncpa [#allocation4], 0
    // Predicated region
    $region2: #{tpu_custom_call.1} parent=1 // pred_check
      _
    $region3: #{tpu_custom_call.1} parent=1 // pred_check_branch
      %11 = sbr.rel (0) target = $region5
    $region4: #{tpu_custom_call.1} parent=1 // pred_region
      %s12 = sadd.s32 0, 0
      %p13 = scmp.lt.s32.totalorder %s12, 0
      %s14 = scalar_select %p13, %s12, 0
      %s16 = ssub.s32 128, 128
      %17 = vsyncadd [#allocation3], %s16
      %s18 = smul.addr %s14, 128
      %s19 = scalar_lea.hbm %s0, %s18
      %s21 = sshll.u32 [#allocation2], 4
      %s22 = int_to_ptr.vmem [resolvable:$true] %s21
      %24 = dma.hbm_to_vmem [thread:$0]  %s19, 128, %s22, [#allocation3]
    $region5: #{tpu_custom_call.1} parent=1 // pred_fallthru
      _
    // Predicated region
    $region6: #{tpu_custom_call.1} parent=1 // pred_check
      _
    $region7: #{tpu_custom_call.1} parent=1 // pred_check_branch
      %26 = sbr.rel (0) target = $region9
    $region8: #{tpu_custom_call.1} parent=1 // pred_region
      %s27 = sadd.s32 0, 0
      %p28 = scmp.lt.s32.totalorder %s27, 0
      %s29 = scalar_select %p28, %s27, 0
      %s31 = ssub.s32 128, 128
      %32 = vsyncadd [#allocation6], %s31
      %s33 = smul.addr %s29, 128
      %s34 = scalar_lea.hbm %s1, %s33
      %s36 = sshll.u32 [#allocation5], 4
      %s37 = int_to_ptr.vmem [resolvable:$true] %s36
      %39 = dma.hbm_to_vmem [thread:$0]  %s34, 128, %s37, [#allocation6]
    $region9: #{tpu_custom_call.1} parent=1 // pred_fallthru
      _
    // Predicated region
    $region10: #{tpu_custom_call.1} parent=1 // pred_check
      _
    $region11: #{tpu_custom_call.1} parent=1 // pred_check_branch
      %41 = sbr.rel (0) target = $region13
    $region12: #{tpu_custom_call.1} parent=1 // pred_region
      %42 = dma.done [#allocation3], 128
    $region13: #{tpu_custom_call.1} parent=1 // pred_fallthru
      _
    // Predicated region
    $region14: #{tpu_custom_call.1} parent=1 // pred_check
      _
    $region15: #{tpu_custom_call.1} parent=1 // pred_check_branch
      %44 = sbr.rel (0) target = $region17
    $region16: #{tpu_custom_call.1} parent=1 // pred_region
      %45 = dma.done [#allocation6], 128
    $region17: #{tpu_custom_call.1} parent=1 // pred_fallthru
      _
    %s46 = sadd.s32 0, 0
    %p47 = scmp.lt.s32.totalorder %s46, 0
    %s48 = scalar_select %p47, %s46, 0
    %s49 = sadd.s32 0, 0
    %p50 = scmp.lt.s32.totalorder %s49, 0
    %s51 = scalar_select %p50, %s49, 0
    %p52 = scmp.eq.s32.totalorder 0, 0
    // Predicated region
    $region18: #{tpu_custom_call.1} parent=1 // pred_check
      %p53 = pneg %p52
    $region19: #{tpu_custom_call.1} parent=1 // pred_check_branch
      %55 = sbr.rel (%p53) target = $region21
    $region20: #{tpu_custom_call.1} parent=1 // pred_region
      %vm56 = vcmask 261120
      %57 = vst.msk [vmem:[#allocation7] sm:$0xff] %vm56, 0.0
    $region21: #{tpu_custom_call.1} parent=1 // pred_fallthru
      _
    %v58 = vld [vmem:[#allocation2] sm:$0xff]
    %v59 = vld [vmem:[#allocation5] sm:$0xff]
    %v60 = vadd.f32 %v58, 1e-08
    %v61 = vlog2.pop %v60
    %v62 = vmul.f32 %v61, 0.6931472
    %v63 = vmul.f32 %v59, %v62
    %v64 = vld [vmem:[#allocation7] sm:$0xff]
    %v65 = vadd.f32 %v63, 0.0
    %v66 = vadd.f32 %v64, %v65
    %vm67 = vcmask 261120
    %68 = vst.msk [vmem:[#allocation7] sm:$0xff] %vm67, %v66
    // Predicated region
    $region22: #{tpu_custom_call.1} parent=1 // pred_check
      _
    $region23: #{tpu_custom_call.1} parent=1 // pred_check_branch
      %70 = sbr.rel (0) target = $region25
    $region24: #{tpu_custom_call.1} parent=1 // pred_region
      %s72 = ssub.s32 128, 128
      %73 = vsyncadd [#allocation4], %s72
      %s75 = sshll.u32 [#allocation7], 4
      %s76 = int_to_ptr.vmem [resolvable:$true] %s75
      %78 = dma.vmem_to_hbm [thread:$0]  %s76, 128, %s2, [#allocation4]
    $region25: #{tpu_custom_call.1} parent=1 // pred_fallthru
      _
    // Predicated region
    $region26: #{tpu_custom_call.1} parent=1 // pred_check
      _
    $region27: #{tpu_custom_call.1} parent=1 // pred_check_branch
      %80 = sbr.rel (0) target = $region29
    $region28: #{tpu_custom_call.1} parent=1 // pred_region
      %81 = dma.done [#allocation4], 128
    $region29: #{tpu_custom_call.1} parent=1 // pred_fallthru
      _
    %82 = vsyncpa [#allocation3], 1
    %83 = vsyncpa [#allocation6], 1
    %84 = vsyncpa [#allocation4], 1

</llo_original>
